<compile_context>
chip_gen: v7x
topology: tpu7x:2x2x1
jax: 0.10.0
libtpu: 0.0.40
codegen_flags: <defaults>
</compile_context>

<pallas_src>
import functools
import math

import jax
import jax.numpy as jnp
from jax.experimental import pallas as pl
from jax.experimental.pallas import tpu as pltpu

_LANE = 128
_MIN_SPLIT_BYTES = 1 << 20  # slabs above this get >= 2 grid steps (2-TC v7x)


def _ceil_div(a: int, b: int) -> int:
    return -(-a // b)


def _round_up(a: int, m: int) -> int:
    return _ceil_div(a, m) * m


def _sublane_multiple(dtype) -> int:
    """Min sublane multiple so packed dtypes tile cleanly (8 f32, 16 bf16, 32 i8)."""
    itemsize = jnp.dtype(dtype).itemsize
    return max(8, 32 // max(itemsize, 1))


@functools.lru_cache(maxsize=1)
def _target_tile_bytes() -> int:
    """Per-generation tile target: bigger tiles on higher-HBM-BW chips."""
    try:
        kind = jax.devices()[0].device_kind.lower()
    except Exception:  # pragma: no cover - be safe on exotic backends
        return 2 * 1024 * 1024
    if "v7" in kind or "tpu7" in kind or "7x" in kind:
        # ~3.2 TB/s HBM: amortize per-step overhead; 4x double-buffered 6 MiB
        # tiles (~25 MiB) still fit comfortably in v7x's 64 MiB VMEM.
        return 6 * 1024 * 1024
    if "v6" in kind or "tpu6" in kind:
        return 4 * 1024 * 1024
    return 2 * 1024 * 1024  # v5e and unknown chips


def _choose_cols_exact(n: int, sub: int) -> int:
    """Widest lane-dense width dividing n exactly, preferring >= sub rows."""
    divisors = [c for c in (4096, 2048, 1024, 512, 256, _LANE) if n % c == 0]
    if not divisors:
        return 0
    tall = [c for c in divisors if n // c >= sub]
    return max(tall) if tall else min(divisors)


def _choose_cols_ragged(n: int, sub: int) -> int:
    """Width for the lane-dense prefix of a non-128-divisible tensor."""
    for c in (4096, 2048, 1024, 512, 256, _LANE):
        if n // c >= sub:
            return c
    return _LANE


def _choose_block_rows(rows: int, cols: int, itemsize: int, sub: int) -> int:
    row_bytes = cols * itemsize
    slab_bytes = rows * row_bytes
    target_rows = max(sub, (_target_tile_bytes() // row_bytes) // sub * sub)

    big = slab_bytes > _MIN_SPLIT_BYTES
    if big and rows > sub:
        # Guarantee >= 2 grid steps so the "parallel" axis shards across both
        # v7x TensorCores (harmless on 1-TC v5e/v6e).
        half = max(sub, _round_up(_ceil_div(rows, 2), sub))
        target_rows = min(target_rows, half)

    if rows <= target_rows:
        return rows  # single full-extent block (always legal)

    # Prefer an exact divisor of rows near the target (no masked boundary
    # block): search down to target/2, then up to 2*target.
    block_rows = target_rows
    lo = max(sub, (target_rows // 2) // sub * sub)
    hi = min(rows, 2 * target_rows)
    found = None
    for cand in range(target_rows, lo - 1, -sub):
        if rows % cand == 0:
            found = cand
            break
    if found is None:
        for cand in range(target_rows + sub, hi + 1, sub):
            if rows % cand == 0:
                found = cand
                break
    if found is not None:
        block_rows = found

    # Short odd grids on a big slab: prefer one extra (smaller) block so a
    # 2-TC split is balanced (ceil(g/2) vs floor(g/2) matters when g is small).
    if big:
        g = _ceil_div(rows, block_rows)
        if g % 2 == 1 and g > 1 and g < 8:
            alt = max(sub, _round_up(_ceil_div(rows, g + 1), sub))
            if alt <= rows and _ceil_div(rows, alt) % 2 == 0:
                block_rows = alt
    return block_rows


def _scaler_kernel(scale_ref, x_ref, o_ref):
    # scale_ref: (1,) f32 in SMEM; x_ref / o_ref: (block_rows, cols) VMEM tiles.
    s = scale_ref[0]
    if jnp.issubdtype(o_ref.dtype, jnp.floating):
        # Native-dtype multiply (bf16 on v6e/v7x VALUs; matches PyTorch's
        # promotion, which demotes the 0-d scale to the input dtype).
        o_ref[...] = x_ref[...] * s.astype(o_ref.dtype)
    else:
        # TODO(synk): PyTorch promotes int_input * float_scale to float; here
        # we keep the input dtype (truncating cast) for layout simplicity.
        o_ref[...] = (x_ref[...].astype(jnp.float32) * s).astype(o_ref.dtype)


def _run_pallas(x2d, scale_arr, donate: bool):
    rows, cols = x2d.shape
    dtype = x2d.dtype
    itemsize = jnp.dtype(dtype).itemsize
    sub = _sublane_multiple(dtype)
    block_rows = _choose_block_rows(rows, cols, itemsize, sub)
    grid = (pl.cdiv(rows, block_rows),)

    tile_bytes = block_rows * cols * itemsize
    # 2 double-buffered input tiles + 2 double-buffered output tiles + headroom.
    vmem_limit = min(max(4 * tile_bytes + (1 << 20), 8 << 20), 96 << 20)

    extra = {}
    if donate:
        # scale is input 0, x2d is input 1; output 0 reuses x2d's buffer.
        extra["input_output_aliases"] = {1: 0}

    return pl.pallas_call(
        _scaler_kernel,
        out_shape=jax.ShapeDtypeStruct((rows, cols), dtype),
        grid_spec=pltpu.PrefetchScalarGridSpec(
            num_scalar_prefetch=0,
            grid=grid,
            in_specs=[
                pl.BlockSpec(memory_space=pltpu.SMEM),               # scale scalar
                pl.BlockSpec((block_rows, cols), lambda i: (i, 0)),  # input tile
            ],
            out_specs=pl.BlockSpec((block_rows, cols), lambda i: (i, 0)),
        ),
        compiler_params=pltpu.CompilerParams(
            dimension_semantics=("parallel",),
            vmem_limit_bytes=vmem_limit,
        ),
        cost_estimate=pl.CostEstimate(
            flops=rows * cols,
            transcendentals=0,
            bytes_accessed=2 * rows * cols * itemsize,
        ),
        **extra,
    )(scale_arr, x2d)


def _apply_scale_jnp(v, scale_f32, dtype):
    """Tiny (<cols elements) ragged-tail path, consistent with the kernel."""
    if jnp.issubdtype(dtype, jnp.floating):
        return v * scale_f32[0].astype(dtype)
    return (v.astype(jnp.float32) * scale_f32[0]).astype(dtype)


@functools.partial(jax.jit, static_argnames=("donate",))
def _scaler_forward_impl(x, scale, donate: bool = False):
    orig_shape = x.shape
    dtype = x.dtype
    n = math.prod(orig_shape) if orig_shape else 1
    if n == 0:
        return x  # empty tensor: nothing to do

    scale_f32 = jnp.asarray(scale, dtype=jnp.float32).reshape(1)
    sub = _sublane_multiple(dtype)
    flat = x.reshape(-1)

    cols = _choose_cols_exact(n, sub)
    if cols:
        # Clean path: the flatten->(rows, cols) reshape is a bitcast (no copy).
        out2d = _run_pallas(flat.reshape(n // cols, cols), scale_f32, donate)
        return out2d.reshape(orig_shape)

    # Ragged path (n % 128 != 0): Pallas on the lane-dense prefix, plain jnp
    # on the (< cols) tail. No whole-tensor pad or trailing slice.
    cols = _choose_cols_ragged(n, sub)
    n_main = (n // cols) * cols
    tail_out = _apply_scale_jnp(flat[n_main:], scale_f32, dtype)
    if n_main == 0:
        out = tail_out
    else:
        main_out = _run_pallas(
            flat[:n_main].reshape(n_main // cols, cols), scale_f32, False
        ).reshape(-1)
        out = jnp.concatenate([main_out, tail_out])
    return out.reshape(orig_shape)


@jax.custom_vjp
def scaler_forward(x, scale):
    """Computes x * scale with a Pallas TPU kernel (differentiable)."""
    return _scaler_forward_impl(x, scale)


def _scaler_fwd(x, scale):
    return _scaler_forward_impl(x, scale), (x, scale)


def _scaler_bwd(res, g):
    x, scale = res
    dx = _scaler_forward_impl(g.astype(x.dtype), scale).astype(x.dtype)
    dscale = jnp.sum(g.astype(jnp.float32) * x.astype(jnp.float32))
    dscale = dscale.astype(jnp.asarray(scale).dtype)
    return dx, dscale


scaler_forward.defvjp(_scaler_fwd, _scaler_bwd)


class ScalerPallas:
    """Mirror of the PyTorch `Scaler` module.

    If `scale is None`, a learnable scalar parameter initialized to 1.0 is
    used (matching nn.Parameter(torch.tensor(1.0))). Otherwise the fixed
    float is used.

    NOTE: when `Scaler` sits next to a conv/matmul/norm in a full network,
    letting XLA fuse the scalar multiply into that op avoids the 2n bytes of
    HBM traffic this standalone kernel necessarily pays.
    """

    def __init__(self, scale=None):
        if scale is None:
            self.scale = jnp.array(1.0, dtype=jnp.float32)
        else:
            self.scale = float(scale)

    def __call__(self, x):
        return scaler_forward(x, self.scale)


if __name__ == "__main__":
    key = jax.random.PRNGKey(0)
    # NCHW input, consistent with conv-style PyTorch usage.
    x = jax.random.normal(key, (2, 4, 16, 16), dtype=jnp.float32)

    # Case 1: learnable scale param (init 1.0) -> identity.
    mod_param = ScalerPallas(scale=None)
    y1 = jax.block_until_ready(mod_param(x))
    assert y1.shape == x.shape and y1.dtype == x.dtype
    assert jnp.allclose(y1, x, atol=1e-6)

    # Case 2: fixed float scale.
    mod_fixed = ScalerPallas(scale=2.5)
    y2 = jax.block_until_ready(mod_fixed(x))
    assert jnp.allclose(y2, x * 2.5, atol=1e-6)

    # Case 3: bf16 input with element count not divisible by 128
    # (exercises the ragged prefix+tail path and native bf16 multiply).
    xb = jax.random.normal(jax.random.PRNGKey(1), (3, 5, 67), dtype=jnp.bfloat16)
    y3 = jax.block_until_ready(mod_fixed(xb))
    ref3 = (xb.astype(jnp.float32) * 2.5).astype(jnp.bfloat16)
    assert y3.shape == xb.shape and y3.dtype == xb.dtype
    assert jnp.allclose(y3.astype(jnp.float32), ref3.astype(jnp.float32), atol=1e-2)

    # Case 4: medium tensor (4 MiB) -> multi-step (even) grid, big tiles.
    x4 = jax.random.normal(jax.random.PRNGKey(2), (8, 32, 64, 64), dtype=jnp.float32)
    mod_15 = ScalerPallas(scale=1.5)
    y4 = jax.block_until_ready(mod_15(x4))
    assert jnp.allclose(y4, x4 * 1.5, atol=1e-5)

    # Case 5: in-place-friendly variant (input_output_aliases) for callers
    # that donate the activation at their jit boundary.
    @functools.partial(jax.jit, donate_argnums=0)
    def scaled_donated(v):
        return _scaler_forward_impl(v, 2.0, donate=True)

    xt = jnp.full((8, 256), 3.0, dtype=jnp.float32)
    yt = jax.block_until_ready(scaled_donated(xt))
    assert jnp.allclose(yt, 6.0, atol=1e-6)

    # Case 6: gradients through the learnable scale (custom_vjp).
    scale0 = jnp.array(3.0, dtype=jnp.float32)
    g_x, g_s = jax.grad(lambda a, s: jnp.sum(scaler_forward(a, s)), argnums=(0, 1))(
        x, scale0
    )
    g_x, g_s = jax.block_until_ready((g_x, g_s))
    assert jnp.allclose(g_x, jnp.full_like(x, 3.0), atol=1e-5)
    assert jnp.allclose(g_s, jnp.sum(x), atol=1e-3)

    print("KERNEL_OK")
</pallas_src>

<mosaic_0001>
module attributes {stable_mosaic.version = 11 : i64} {
  func.func @_scaler_kernel(%arg0: i32, %arg1: memref<1xf32, #tpu.memory_space<smem>>, %arg2: memref<8x256xf32, #tpu.memory_space<vmem>>, %arg3: memref<8x256xf32, #tpu.memory_space<vmem>>) attributes {dimension_semantics = [#tpu.dimension_semantics<parallel>], iteration_bounds = array<i64: 1>, scalar_prefetch = 0 : i64, scratch_operands = 0 : i64, tpu.core_type = #tpu.core_type<tc>, window_params = [{transform_indices = @transform_0, window_bounds = array<i64: 1>}, {transform_indices = @transform_1, window_bounds = array<i64: 8, 256>}, {transform_indices = @transform_2, window_bounds = array<i64: 8, 256>}]} {
    %c0 = arith.constant 0 : index
    %0 = memref.load %arg1[%c0] : memref<1xf32, #tpu.memory_space<smem>>
    %c0_0 = arith.constant 0 : index
    %c0_1 = arith.constant 0 : index
    %1 = vector.load %arg2[%c0_0, %c0_1] : memref<8x256xf32, #tpu.memory_space<vmem>>, vector<8x256xf32>
    %2 = vector.broadcast %0 : f32 to vector<8x256xf32>
    %3 = arith.mulf %1, %2 : vector<8x256xf32>
    %c0_2 = arith.constant 0 : index
    %c0_3 = arith.constant 0 : index
    %4 = vector.load %arg3[%c0_2, %c0_3] : memref<8x256xf32, #tpu.memory_space<vmem>>, vector<8x256xf32>
    tpu.vector_store %arg3[%c0_2, %c0_3], %3 {strides = array<i32>} : memref<8x256xf32, #tpu.memory_space<vmem>>, vector<8x256xf32>,
    return
  }
  func.func @transform_0(%arg0: i32) -> i32 {
    %c0_i32 = arith.constant 0 : i32
    %c0_i32_0 = arith.constant 0 : i32
    return %c0_i32 : i32
  }
  func.func @transform_1(%arg0: i32) -> (i32, i32) {
    %c0_i32 = arith.constant 0 : i32
    %c0_i32_0 = arith.constant 0 : i32
    return %arg0, %c0_i32 : i32, i32
  }
  func.func @transform_2(%arg0: i32) -> (i32, i32) {
    %c0_i32 = arith.constant 0 : i32
    %c0_i32_0 = arith.constant 0 : i32
    return %arg0, %c0_i32 : i32, i32
  }
}

</mosaic_0001>

<llo_original>
// kernel: _scaler_forward_impl.1
$region0: #{_scaler_forward_impl.1}
  #allocation0 [shape = 'u32[]', space=smem, size = 0x4, offset = 0x4, fixed_abs, tag = 'smem constant byte address 0x4 - core index']
  #allocation1 [shape = 'u32[144,128]{1,0:T(1,128)}', space=vmem, size = 0x12000, scoped, tag = 'internal scratch']
  #allocation2 [shape = 'f32[1]{0:T(128)S(6)}', space=smem, size = 0x200, scoped, tag = 'scoped memory for _scaler_forward_impl.1']
  %s0 = inlined_call_operand.<no memory space> [shape: f32[1], index: 0, kind: input, shape index: {}]
  %s1 = inlined_call_operand.vmem [shape: f32[8,256], index: 1, kind: input, shape index: {}]
  %s2 = inlined_call_operand.vmem [shape: f32[8,256], index: 2, kind: output, shape index: {}]
  %s3 = sld [smem:[#allocation0]]
  $region18: #{_scaler_forward_impl.1} parent=0
    _
  %s5 = ssub.s32 1, %s3
  %s6 = scalar_select 0, %s5, %s3
  %7 = sst [smem:[#allocation2]] %s0
  // Predicated region
  $region2: #{_scaler_forward_impl.1} parent=0 // pred_check
    _
  $region3: #{_scaler_forward_impl.1} parent=0 // pred_check_branch
    %9 = sbr.rel (0) target = $region5
  $region4: #{_scaler_forward_impl.1} parent=0 // pred_region
    _
  $region5: #{_scaler_forward_impl.1} parent=0 // pred_fallthru
    _
  // Predicated region
  $region6: #{_scaler_forward_impl.1} parent=0 // pred_check
    _
  $region7: #{_scaler_forward_impl.1} parent=0 // pred_check_branch
    %11 = sbr.rel (0) target = $region9
  $region8: #{_scaler_forward_impl.1} parent=0 // pred_region
    _
  $region9: #{_scaler_forward_impl.1} parent=0 // pred_fallthru
    _
  %s12 = sld [smem:[#allocation2]]
  %v13 = vld [vmem:[%s1] sm:$0xff]
  %v14 = vld [vmem:[%s1 + $0x8] sm:$0xff]
  %v15 = vstv %s12
  %v16 = vmul.f32 %v13, %v15
  %v17 = vmul.f32 %v14, %v15
  %18 = vst [vmem:[%s2] sm:$0xff] %v16
  %19 = vst [vmem:[%s2 + $0x8] sm:$0xff] %v17
  // Predicated region
  $region10: #{_scaler_forward_impl.1} parent=0 // pred_check
    _
  $region11: #{_scaler_forward_impl.1} parent=0 // pred_check_branch
    %21 = sbr.rel (0) target = $region13
  $region12: #{_scaler_forward_impl.1} parent=0 // pred_region
    _
  $region13: #{_scaler_forward_impl.1} parent=0 // pred_fallthru
    _
  // Predicated region
  $region14: #{_scaler_forward_impl.1} parent=0 // pred_check
    _
  $region15: #{_scaler_forward_impl.1} parent=0 // pred_check_branch
    %23 = sbr.rel (0) target = $region17
  $region16: #{_scaler_forward_impl.1} parent=0 // pred_region
    _
  $region17: #{_scaler_forward_impl.1} parent=0 // pred_fallthru
    _

</llo_original>
